<compile_context>
chip_gen: v6e
topology: v6e:2x2x1
jax: 0.10.0
libtpu: 0.0.40
codegen_flags: <defaults>
</compile_context>

<pallas_src>
import jax
import jax.numpy as jnp
import numpy as np
from jax.experimental import pallas as pl
from jax.experimental.pallas import tpu as pltpu


# ---------------------------------------------------------------------------
# Pass 1: 3x3 conv (3 row-shifted, width-packed matmuls) + per-channel GN stats
# ---------------------------------------------------------------------------
def _conv_stats_kernel(xm_ref, xh_ref, wt_ref, o_ref, stats_ref):
    # xm_ref:    (1, tile_h, W, 3*Cin) bf16  rows [tg*tile_h, tg*tile_h+tile_h) of the padded, kx-packed input
    # xh_ref:    (1, 2, W, 3*Cin)      bf16  rows [tg*tile_h+tile_h, +2) (bottom halo, same HBM array)
    # wt_ref:    (3, 3*Cin, Cout)      bf16  resident weights; wt_ref[ky] is the K=3*Cin slab for row-tap ky
    # o_ref:     (1, tile_h, W, Cout)  bf16  conv output tile (bf16 inter-pass storage)
    # stats_ref: (1, 1, 2, Cout)       f32   per-channel [sum; sumsq], accumulated over the innermost axis
    t = pl.program_id(2)
    th = xm_ref.shape[1]
    w = xm_ref.shape[2]
    c3 = xm_ref.shape[3]
    cout = o_ref.shape[3]
    m = th * w

    # row-tap ky = 0: all rows come from the main block
    acc = jnp.dot(xm_ref[0].reshape(m, c3), wt_ref[0],
                  preferred_element_type=jnp.float32)
    # row-taps ky = 1, 2: bottom ky rows come straight from the halo ref (no full-tile concat copy)
    for ky in (1, 2):
        rows = jnp.concatenate([xm_ref[0, ky:th], xh_ref[0, 0:ky]], axis=0)   # (tile_h, W, 3*Cin)
        acc = acc + jnp.dot(rows.reshape(m, c3), wt_ref[ky],
                            preferred_element_type=jnp.float32)

    yb = acc.astype(jnp.bfloat16)
    o_ref[0] = yb.reshape(th, w, cout)

    # GroupNorm partial stats, computed from the bf16-rounded values pass 2 will actually read
    yf = yb.astype(jnp.float32)
    s = jnp.sum(yf, axis=0, keepdims=True)          # (1, Cout)
    sq = jnp.sum(yf * yf, axis=0, keepdims=True)    # (1, Cout)
    st = jnp.concatenate([s, sq], axis=0)           # (2, Cout)

    @pl.when(t == 0)
    def _():
        stats_ref[...] = jnp.zeros_like(stats_ref)

    stats_ref[0, 0] += st


# ---------------------------------------------------------------------------
# Pass 2: folded GroupNorm affine (per-sample, per-channel scale/shift) + ReLU
# ---------------------------------------------------------------------------
def _affine_relu_kernel(y_ref, scale_ref, shift_ref, o_ref):
    # y_ref: (1, tile_h, W, Cout) bf16 ; scale/shift: (1, 1, Cout) f32 ; o_ref f32
    y = y_ref[...].astype(jnp.float32)
    sc = scale_ref[...].reshape(1, 1, 1, -1)
    sh = shift_ref[...].reshape(1, 1, 1, -1)
    o_ref[...] = jnp.maximum(y * sc + sh, 0.0)


# ---------------------------------------------------------------------------
# helpers
# ---------------------------------------------------------------------------
def _vmem_capacity_bytes():
    try:
        return int(getattr(pltpu.get_tpu_info(), "vmem_capacity_bytes", 64 << 20))
    except Exception:
        return 64 << 20   # conservative (v7x-sized) fallback


def _pick_tile_h(h, w, c3, cout, budget_bytes):
    """Largest even divisor of H whose pass-1 working set fits the generation-aware budget.

    Working set per grid step (conservative): double-buffered bf16 main/halo input blocks,
    double-buffered bf16 conv-output block, resident bf16 weights (counted twice), the f32 stats
    block, the live f32 accumulator and ~one tile of concat/reshape temporaries.
    """
    best = None
    for d in range(2, h + 1, 2):
        if h % d:
            continue
        per = (2 * d * w * c3 * 2            # main input, bf16, double-buffered
               + 2 * 2 * w * c3 * 2          # halo, bf16, double-buffered
               + 2 * d * w * cout * 2        # conv output, bf16, double-buffered
               + 2 * 2 * cout * 4            # stats block
               + 2 * 3 * c3 * cout * 2       # weights (resident; counted double to be safe)
               + d * w * cout * 4            # live f32 accumulator
               + 2 * d * w * c3 * 2)         # concat / reshape temporaries
        if per <= budget_bytes:
            best = d
    return best if best is not None else 2


def _upsample_matrix(n_in, n_out):
    a = np.zeros((n_out, n_in), np.float32)
    if n_in == 1:
        a[:, 0] = 1.0
        return a
    coords = np.arange(n_out, dtype=np.float64) * (n_in - 1) / (n_out - 1)
    i0 = np.minimum(np.floor(coords).astype(np.int64), n_in - 1)
    i1 = np.minimum(i0 + 1, n_in - 1)
    w = (coords - i0).astype(np.float32)
    a[np.arange(n_out), i0] += 1.0 - w
    a[np.arange(n_out), i1] += w
    return a


def _upsample2x_align_corners_nhwc(y):
    # F.interpolate(scale_factor=2, mode='bilinear', align_corners=True) as two small dense
    # interpolation matmuls (gather-free, MXU-friendly).
    n, h, w, c = y.shape
    ah = jnp.asarray(_upsample_matrix(h, 2 * h))
    aw = jnp.asarray(_upsample_matrix(w, 2 * w))
    y = jnp.einsum('oh,nhwc->nowc', ah, y)
    y = jnp.einsum('pw,nowc->nopc', aw, y)
    return y


# ---------------------------------------------------------------------------
# forward
# ---------------------------------------------------------------------------
def conv3x3_gn_relu(x_nchw, weight, gamma, beta, *, num_groups=32, eps=1e-5,
                    upsample=False, tile_h=None):
    """Forward of Conv3x3GNReLU.  x_nchw: (N, Cin, H, W); weight: (Cout, Cin, 3, 3)."""
    N, Cin, H, W = x_nchw.shape
    Cout = weight.shape[0]
    assert Cout % num_groups == 0, "GroupNorm(32, C) requires C % 32 == 0"
    cpg = Cout // num_groups
    c3 = 3 * Cin

    vmem_cap = _vmem_capacity_bytes()
    if tile_h is None:
        tile_h = _pick_tile_h(H, W, c3, Cout, budget_bytes=int(vmem_cap * 0.4))
    # TODO(synk): add a remainder tile (BoundedSlice / masking) for H not divisible by tile_h.
    assert H % tile_h == 0 and tile_h % 2 == 0, "tile_h must be even and divide H"
    n_t = H // tile_h
    p_split = 2 if (n_t % 2 == 0) else 1      # feed both v7x TensorCores even at batch 1
    npt = n_t // p_split
    th2 = tile_h // 2
    vmem_limit = max(32 << 20, min(int(vmem_cap * 0.8), 100 << 20))

    # --- glue: NCHW -> NHWC bf16 (cast before pad), zero-pad spatially, fold the 3 width taps
    #     into the channel dim:  xq[n, y, x, kx*Cin + c] = x_padded[n, y, x + kx, c]
    x = jnp.transpose(x_nchw, (0, 2, 3, 1)).astype(jnp.bfloat16)
    xp = jnp.pad(x, ((0, 0), (1, 1), (1, 1), (0, 0)))                                # (N, H+2, W+2, Cin)
    xq = jnp.concatenate([xp[:, :, kx:kx + W, :] for kx in range(3)], axis=-1)       # (N, H+2, W, 3*Cin)
    # TODO(synk): for Cin >= 128 this width-packing could move inside the kernel (lane-aligned
    # concat) to avoid reading the input ~3x in the glue pass; irrelevant at small Cin.

    # weight (Cout, Cin, 3, 3) -> (3, 3*Cin, Cout): wt[ky, kx*Cin + c, o] = weight[o, c, ky, kx]
    wt = jnp.transpose(weight, (2, 3, 1, 0)).reshape(3, c3, Cout).astype(jnp.bfloat16)

    # ---- pass 1: conv + partial GN stats (bf16 activations on the MXU, f32 accumulation) ----
    conv_out, stats = pl.pallas_call(
        _conv_stats_kernel,
        out_shape=(jax.ShapeDtypeStruct((N, H, W, Cout), jnp.bfloat16),
                   jax.ShapeDtypeStruct((N, p_split, 2, Cout), jnp.float32)),
        grid=(N, p_split, npt),
        in_specs=[
            # main rows [tg*tile_h, tg*tile_h + tile_h) of xq
            pl.BlockSpec((1, tile_h, W, c3),
                         lambda n, p, t, npt=npt: (n, p * npt + t, 0, 0)),
            # 2-row bottom halo, read through a second view of the same array
            pl.BlockSpec((1, 2, W, c3),
                         lambda n, p, t, npt=npt, th2=th2: (n, (p * npt + t + 1) * th2, 0, 0)),
            # resident packed weights
            # TODO(synk): could mark this block pipeline_mode=pl.Buffered(1) to skip its double buffer.
            pl.BlockSpec((3, c3, Cout), lambda n, p, t: (0, 0, 0)),
        ],
        out_specs=(
            pl.BlockSpec((1, tile_h, W, Cout),
                         lambda n, p, t, npt=npt: (n, p * npt + t, 0, 0)),
            pl.BlockSpec((1, 1, 2, Cout), lambda n, p, t: (n, p, 0, 0)),   # resident accumulator over t
        ),
        compiler_params=pltpu.CompilerParams(
            dimension_semantics=("parallel", "parallel", "arbitrary"),
            vmem_limit_bytes=vmem_limit),
    )(xq, xq, wt)

    # ---- GroupNorm finalize (tiny per-(N, G) math in XLA): fold into a per-channel affine ----
    ch_sum = stats[:, :, 0, :].sum(axis=1)                       # (N, Cout)
    ch_sq = stats[:, :, 1, :].sum(axis=1)
    g_sum = ch_sum.reshape(N, num_groups, cpg).sum(axis=2)
    g_sq = ch_sq.reshape(N, num_groups, cpg).sum(axis=2)
    cnt = jnp.float32(H * W * cpg)
    mean = g_sum / cnt
    # E[x^2] - mean^2 (biased, like torch GN); clamped against f32 cancellation for large means.
    var = jnp.maximum(g_sq / cnt - mean * mean, 0.0)
    inv = jax.lax.rsqrt(var + eps)
    mean_c = jnp.repeat(mean, cpg, axis=1)                       # (N, Cout)
    inv_c = jnp.repeat(inv, cpg, axis=1)
    scale = gamma.astype(jnp.float32)[None, :] * inv_c
    shift = beta.astype(jnp.float32)[None, :] - mean_c * scale
    scale = scale.reshape(N, 1, Cout)
    shift = shift.reshape(N, 1, Cout)

    # ---- pass 2: folded GN affine + ReLU, fully parallel grid ----
    out = pl.pallas_call(
        _affine_relu_kernel,
        out_shape=jax.ShapeDtypeStruct((N, H, W, Cout), jnp.float32),
        grid=(N, n_t),
        in_specs=[
            pl.BlockSpec((1, tile_h, W, Cout), lambda n, t: (n, t, 0, 0)),
            pl.BlockSpec((1, 1, Cout), lambda n, t: (n, 0, 0)),
            pl.BlockSpec((1, 1, Cout), lambda n, t: (n, 0, 0)),
        ],
        out_specs=pl.BlockSpec((1, tile_h, W, Cout), lambda n, t: (n, t, 0, 0)),
        compiler_params=pltpu.CompilerParams(
            dimension_semantics=("parallel", "parallel"),
            vmem_limit_bytes=vmem_limit),
    )(conv_out, scale, shift)

    # TODO(synk): the 2x upsample row interpolation and the NHWC->NCHW transpose could be folded
    # into the pass-2 epilogue to save one more HBM pass each.
    y = out
    if upsample:
        y = _upsample2x_align_corners_nhwc(y)
    return jnp.transpose(y, (0, 3, 1, 2))                        # back to NCHW


# ---------------------------------------------------------------------------
# pure-JAX reference (mirrors the PyTorch module; conv inputs and the inter-pass
# activation rounded to bf16 to match the kernel, all other math in f32)
# ---------------------------------------------------------------------------
def _bilinear_upsample_x2_align_corners_gather(x):
    N, H, W, C = x.shape
    Ho, Wo = 2 * H, 2 * W
    ys = jnp.arange(Ho, dtype=jnp.float32) * (H - 1) / (Ho - 1)
    xs = jnp.arange(Wo, dtype=jnp.float32) * (W - 1) / (Wo - 1)
    y0 = jnp.floor(ys).astype(jnp.int32)
    y1 = jnp.minimum(y0 + 1, H - 1)
    wy = ys - y0.astype(jnp.float32)
    x0 = jnp.floor(xs).astype(jnp.int32)
    x1 = jnp.minimum(x0 + 1, W - 1)
    wx = xs - x0.astype(jnp.float32)
    top = x[:, y0, :, :]
    bot = x[:, y1, :, :]
    rows = top * (1 - wy)[None, :, None, None] + bot * wy[None, :, None, None]
    left = rows[:, :, x0, :]
    right = rows[:, :, x1, :]
    return left * (1 - wx)[None, None, :, None] + right * wx[None, None, :, None]


def _reference(x_nchw, weight, gamma, beta, num_groups, eps, upsample):
    xb = x_nchw.astype(jnp.bfloat16).astype(jnp.float32)
    wb = weight.astype(jnp.bfloat16).astype(jnp.float32)
    y = jax.lax.conv_general_dilated(
        xb, wb, window_strides=(1, 1), padding=((1, 1), (1, 1)),
        dimension_numbers=("NCHW", "OIHW", "NCHW"))
    # mirror the kernel's bf16 inter-pass storage (GN statistics see the same rounded values)
    y = y.astype(jnp.bfloat16).astype(jnp.float32)
    N, C, H, W = y.shape
    yg = y.reshape(N, num_groups, -1)
    mean = yg.mean(axis=2, keepdims=True)
    var = yg.var(axis=2, keepdims=True)
    yn = ((yg - mean) / jnp.sqrt(var + eps)).reshape(N, C, H, W)
    yn = yn * gamma[None, :, None, None] + beta[None, :, None, None]
    yn = jnp.maximum(yn, 0.0)
    if upsample:
        yn = jnp.transpose(
            _bilinear_upsample_x2_align_corners_gather(jnp.transpose(yn, (0, 2, 3, 1))),
            (0, 3, 1, 2))
    return yn


if __name__ == "__main__":
    key = jax.random.PRNGKey(0)
    k1, k2, k3, k4 = jax.random.split(key, 4)

    N, Cin, H, W = 2, 4, 16, 16
    Cout = 32  # GroupNorm(32, Cout) requires Cout % 32 == 0

    x = jax.random.normal(k1, (N, Cin, H, W), jnp.float32)
    weight = jax.random.normal(k2, (Cout, Cin, 3, 3), jnp.float32) * 0.1   # conv weight (no bias)
    gamma = 1.0 + 0.1 * jax.random.normal(k3, (Cout,), jnp.float32)        # GN scale
    beta = 0.1 * jax.random.normal(k4, (Cout,), jnp.float32)               # GN shift

    # multi-tile path (2 spatial tiles -> exercises halo reads, the stats accumulator and the
    # two-way TensorCore split) + 2x align_corners upsample
    out = conv3x3_gn_relu(x, weight, gamma, beta, upsample=True, tile_h=8)
    out = jax.block_until_ready(out)
    assert out.shape == (N, Cout, 2 * H, 2 * W)
    ref = _reference(x, weight, gamma, beta, num_groups=32, eps=1e-5, upsample=True)
    # tolerance: with bf16 inter-pass storage, a single bf16 ulp of the conv activation (~0.4%
    # relative) can round differently between the kernel's and the reference's f32 accumulation
    # orders; post-normalization that bounds elementwise error at ~6e-3.
    np.testing.assert_allclose(np.asarray(out), np.asarray(ref), atol=1e-2, rtol=1e-2)

    # auto-tiled (generation-aware) path, no upsample
    out2 = conv3x3_gn_relu(x, weight, gamma, beta, upsample=False)
    out2 = jax.block_until_ready(out2)
    assert out2.shape == (N, Cout, H, W)
    ref2 = _reference(x, weight, gamma, beta, num_groups=32, eps=1e-5, upsample=False)
    np.testing.assert_allclose(np.asarray(out2), np.asarray(ref2), atol=1e-2, rtol=1e-2)

    print("KERNEL_OK")
</pallas_src>

<mosaic_0001>
module attributes {stable_mosaic.version = 11 : i64} {
  func.func @_conv_stats_kernel(%arg0: i32, %arg1: i32, %arg2: i32, %arg3: memref<1x8x16x12xbf16, #tpu.memory_space<vmem>>, %arg4: memref<1x2x16x12xbf16, #tpu.memory_space<vmem>>, %arg5: memref<3x12x32xbf16, #tpu.memory_space<vmem>>, %arg6: memref<1x8x16x32xbf16, #tpu.memory_space<vmem>>, %arg7: memref<1x1x2x32xf32, #tpu.memory_space<vmem>>) attributes {dimension_semantics = [#tpu.dimension_semantics<parallel>, #tpu.dimension_semantics<parallel>, #tpu.dimension_semantics<arbitrary>], iteration_bounds = array<i64: 2, 2, 1>, scalar_prefetch = 0 : i64, scratch_operands = 0 : i64, tpu.core_type = #tpu.core_type<tc>, window_params = [{transform_indices = @transform_0, window_bounds = array<i64: 1, 8, 16, 12>}, {transform_indices = @transform_1, window_bounds = array<i64: 1, 2, 16, 12>}, {pipeline_mode = #tpu.pipeline_mode<synchronous>, transform_indices = @transform_2, window_bounds = array<i64: 3, 12, 32>}, {transform_indices = @transform_3, window_bounds = array<i64: 1, 8, 16, 32>}, {transform_indices = @transform_4, window_bounds = array<i64: 1, 1, 2, 32>}]} {
    %c0 = arith.constant 0 : index
    %c0_0 = arith.constant 0 : index
    %c0_1 = arith.constant 0 : index
    %c0_2 = arith.constant 0 : index
    %0 = vector.load %arg3[%c0, %c0_0, %c0_1, %c0_2] : memref<1x8x16x12xbf16, #tpu.memory_space<vmem>>, vector<1x8x16x12xbf16>
    %1 = vector.shape_cast %0 : vector<1x8x16x12xbf16> to vector<8x16x12xbf16>
    %2 = vector.shape_cast %1 : vector<8x16x12xbf16> to vector<128x12xbf16>
    %c0_3 = arith.constant 0 : index
    %c0_4 = arith.constant 0 : index
    %c0_5 = arith.constant 0 : index
    %3 = vector.load %arg5[%c0_3, %c0_4, %c0_5] : memref<3x12x32xbf16, #tpu.memory_space<vmem>>, vector<1x12x32xbf16>
    %4 = vector.shape_cast %3 : vector<1x12x32xbf16> to vector<12x32xbf16>
    %cst = arith.constant dense<0.000000e+00> : vector<128x32xf32>
    %5 = tpu.matmul %2, %4, %cst {dimension_numbers = #tpu.dot_dimension_numbers<[1], [0], [0], [1], [0, 0, 1, 1], [], []>} : vector<128x12xbf16>, vector<12x32xbf16>, vector<128x32xf32> -> vector<128x32xf32>
    %c0_6 = arith.constant 0 : index
    %c1 = arith.constant 1 : index
    %c0_7 = arith.constant 0 : index
    %c0_8 = arith.constant 0 : index
    %6 = vector.load %arg3[%c0_6, %c1, %c0_7, %c0_8] : memref<1x8x16x12xbf16, #tpu.memory_space<vmem>>, vector<1x7x16x12xbf16>
    %7 = vector.shape_cast %6 : vector<1x7x16x12xbf16> to vector<7x16x12xbf16>
    %c0_9 = arith.constant 0 : index
    %c0_10 = arith.constant 0 : index
    %c0_11 = arith.constant 0 : index
    %c0_12 = arith.constant 0 : index
    %8 = vector.load %arg4[%c0_9, %c0_10, %c0_11, %c0_12] : memref<1x2x16x12xbf16, #tpu.memory_space<vmem>>, vector<1x1x16x12xbf16>
    %9 = vector.shape_cast %8 : vector<1x1x16x12xbf16> to vector<1x16x12xbf16>
    %10 = tpu.concatenate %7, %9 in 0 : vector<7x16x12xbf16>, vector<1x16x12xbf16> -> vector<8x16x12xbf16>
    %11 = vector.shape_cast %10 : vector<8x16x12xbf16> to vector<128x12xbf16>
    %c1_13 = arith.constant 1 : index
    %c0_14 = arith.constant 0 : index
    %c0_15 = arith.constant 0 : index
    %12 = vector.load %arg5[%c1_13, %c0_14, %c0_15] : memref<3x12x32xbf16, #tpu.memory_space<vmem>>, vector<1x12x32xbf16>
    %13 = vector.shape_cast %12 : vector<1x12x32xbf16> to vector<12x32xbf16>
    %cst_16 = arith.constant dense<0.000000e+00> : vector<128x32xf32>
    %14 = tpu.matmul %11, %13, %cst_16 {dimension_numbers = #tpu.dot_dimension_numbers<[1], [0], [0], [1], [0, 0, 1, 1], [], []>} : vector<128x12xbf16>, vector<12x32xbf16>, vector<128x32xf32> -> vector<128x32xf32>
    %15 = arith.addf %5, %14 : vector<128x32xf32>
    %c0_17 = arith.constant 0 : index
    %c2 = arith.constant 2 : index
    %c0_18 = arith.constant 0 : index
    %c0_19 = arith.constant 0 : index
    %16 = vector.load %arg3[%c0_17, %c2, %c0_18, %c0_19] : memref<1x8x16x12xbf16, #tpu.memory_space<vmem>>, vector<1x6x16x12xbf16>
    %17 = vector.shape_cast %16 : vector<1x6x16x12xbf16> to vector<6x16x12xbf16>
    %c0_20 = arith.constant 0 : index
    %c0_21 = arith.constant 0 : index
    %c0_22 = arith.constant 0 : index
    %c0_23 = arith.constant 0 : index
    %18 = vector.load %arg4[%c0_20, %c0_21, %c0_22, %c0_23] : memref<1x2x16x12xbf16, #tpu.memory_space<vmem>>, vector<1x2x16x12xbf16>
    %19 = vector.shape_cast %18 : vector<1x2x16x12xbf16> to vector<2x16x12xbf16>
    %20 = tpu.concatenate %17, %19 in 0 : vector<6x16x12xbf16>, vector<2x16x12xbf16> -> vector<8x16x12xbf16>
    %21 = vector.shape_cast %20 : vector<8x16x12xbf16> to vector<128x12xbf16>
    %c2_24 = arith.constant 2 : index
    %c0_25 = arith.constant 0 : index
    %c0_26 = arith.constant 0 : index
    %22 = vector.load %arg5[%c2_24, %c0_25, %c0_26] : memref<3x12x32xbf16, #tpu.memory_space<vmem>>, vector<1x12x32xbf16>
    %23 = vector.shape_cast %22 : vector<1x12x32xbf16> to vector<12x32xbf16>
    %cst_27 = arith.constant dense<0.000000e+00> : vector<128x32xf32>
    %24 = tpu.matmul %21, %23, %cst_27 {dimension_numbers = #tpu.dot_dimension_numbers<[1], [0], [0], [1], [0, 0, 1, 1], [], []>} : vector<128x12xbf16>, vector<12x32xbf16>, vector<128x32xf32> -> vector<128x32xf32>
    %25 = arith.addf %15, %24 : vector<128x32xf32>
    %26 = arith.truncf %25 : vector<128x32xf32> to vector<128x32xbf16>
    %27 = vector.shape_cast %26 : vector<128x32xbf16> to vector<8x16x32xbf16>
    %c0_28 = arith.constant 0 : index
    %c0_29 = arith.constant 0 : index
    %c0_30 = arith.constant 0 : index
    %c0_31 = arith.constant 0 : index
    %28 = vector.load %arg6[%c0_28, %c0_29, %c0_30, %c0_31] : memref<1x8x16x32xbf16, #tpu.memory_space<vmem>>, vector<1x8x16x32xbf16>
    %29 = vector.shape_cast %28 : vector<1x8x16x32xbf16> to vector<8x16x32xbf16>
    %30 = vector.shape_cast %27 : vector<8x16x32xbf16> to vector<1x8x16x32xbf16>
    tpu.vector_store %arg6[%c0_28, %c0_29, %c0_30, %c0_31], %30 {strides = array<i32>} : memref<1x8x16x32xbf16, #tpu.memory_space<vmem>>, vector<1x8x16x32xbf16>,
    %31 = arith.extf %26 : vector<128x32xbf16> to vector<128x32xf32>
    %cst_32 = arith.constant dense<0.000000e+00> : vector<32xf32>
    %32 = vector.multi_reduction <add>, %31, %cst_32 [0] : vector<128x32xf32> to vector<32xf32>
    %33 = vector.shape_cast %32 : vector<32xf32> to vector<1x32xf32>
    %34 = arith.mulf %31, %31 : vector<128x32xf32>
    %cst_33 = arith.constant dense<0.000000e+00> : vector<32xf32>
    %35 = vector.multi_reduction <add>, %34, %cst_33 [0] : vector<128x32xf32> to vector<32xf32>
    %36 = vector.shape_cast %35 : vector<32xf32> to vector<1x32xf32>
    %37 = tpu.concatenate %33, %36 in 0 : vector<1x32xf32>, vector<1x32xf32> -> vector<2x32xf32>
    %c0_i32 = arith.constant 0 : i32
    %38 = arith.cmpi eq, %arg2, %c0_i32 : i32
    %39 = arith.extui %38 : i1 to i32
    %c0_i32_34 = arith.constant 0 : i32
    %40 = arith.cmpi ne, %39, %c0_i32_34 : i32
    scf.if %40 {
      %cst_43 = arith.constant 0.000000e+00 : f32
      %47 = vector.broadcast %cst_43 : f32 to vector<1x1x2x32xf32>
      %c0_44 = arith.constant 0 : index
      %c0_45 = arith.constant 0 : index
      %c0_46 = arith.constant 0 : index
      %c0_47 = arith.constant 0 : index
      %48 = vector.load %arg7[%c0_44, %c0_45, %c0_46, %c0_47] : memref<1x1x2x32xf32, #tpu.memory_space<vmem>>, vector<1x1x2x32xf32>
      tpu.vector_store %arg7[%c0_44, %c0_45, %c0_46, %c0_47], %47 {strides = array<i32>} : memref<1x1x2x32xf32, #tpu.memory_space<vmem>>, vector<1x1x2x32xf32>,
    } else {
    }
    %c0_35 = arith.constant 0 : index
    %c0_36 = arith.constant 0 : index
    %c0_37 = arith.constant 0 : index
    %c0_38 = arith.constant 0 : index
    %41 = vector.load %arg7[%c0_35, %c0_36, %c0_37, %c0_38] : memref<1x1x2x32xf32, #tpu.memory_space<vmem>>, vector<1x1x2x32xf32>
    %42 = vector.shape_cast %41 : vector<1x1x2x32xf32> to vector<2x32xf32>
    %43 = arith.addf %42, %37 : vector<2x32xf32>
    %c0_39 = arith.constant 0 : index
    %c0_40 = arith.constant 0 : index
    %c0_41 = arith.constant 0 : index
    %c0_42 = arith.constant 0 : index
    %44 = vector.load %arg7[%c0_39, %c0_40, %c0_41, %c0_42] : memref<1x1x2x32xf32, #tpu.memory_space<vmem>>, vector<1x1x2x32xf32>
    %45 = vector.shape_cast %44 : vector<1x1x2x32xf32> to vector<2x32xf32>
    %46 = vector.shape_cast %43 : vector<2x32xf32> to vector<1x1x2x32xf32>
    tpu.vector_store %arg7[%c0_39, %c0_40, %c0_41, %c0_42], %46 {strides = array<i32>} : memref<1x1x2x32xf32, #tpu.memory_space<vmem>>, vector<1x1x2x32xf32>,
    return
  }
  func.func @transform_0(%arg0: i32, %arg1: i32, %arg2: i32) -> (i32, i32, i32, i32) {
    %c1_i32 = arith.constant 1 : i32
    %0 = arith.muli %arg1, %c1_i32 : i32
    %1 = arith.addi %0, %arg2 : i32
    %c0_i32 = arith.constant 0 : i32
    %c0_i32_0 = arith.constant 0 : i32
    %c0_i32_1 = arith.constant 0 : i32
    return %arg0, %1, %c0_i32, %c0_i32_0 : i32, i32, i32, i32
  }
  func.func @transform_1(%arg0: i32, %arg1: i32, %arg2: i32) -> (i32, i32, i32, i32) {
    %c1_i32 = arith.constant 1 : i32
    %0 = arith.muli %arg1, %c1_i32 : i32
    %1 = arith.addi %0, %arg2 : i32
    %c1_i32_0 = arith.constant 1 : i32
    %2 = arith.addi %1, %c1_i32_0 : i32
    %c4_i32 = arith.constant 4 : i32
    %3 = arith.muli %2, %c4_i32 : i32
    %c0_i32 = arith.constant 0 : i32
    %c0_i32_1 = arith.constant 0 : i32
    %c0_i32_2 = arith.constant 0 : i32
    return %arg0, %3, %c0_i32, %c0_i32_1 : i32, i32, i32, i32
  }
  func.func @transform_2(%arg0: i32, %arg1: i32, %arg2: i32) -> (i32, i32, i32) {
    %c0_i32 = arith.constant 0 : i32
    %c0_i32_0 = arith.constant 0 : i32
    %c0_i32_1 = arith.constant 0 : i32
    %c0_i32_2 = arith.constant 0 : i32
    return %c0_i32, %c0_i32_0, %c0_i32_1 : i32, i32, i32
  }
  func.func @transform_3(%arg0: i32, %arg1: i32, %arg2: i32) -> (i32, i32, i32, i32) {
    %c1_i32 = arith.constant 1 : i32
    %0 = arith.muli %arg1, %c1_i32 : i32
    %1 = arith.addi %0, %arg2 : i32
    %c0_i32 = arith.constant 0 : i32
    %c0_i32_0 = arith.constant 0 : i32
    %c0_i32_1 = arith.constant 0 : i32
    return %arg0, %1, %c0_i32, %c0_i32_0 : i32, i32, i32, i32
  }
  func.func @transform_4(%arg0: i32, %arg1: i32, %arg2: i32) -> (i32, i32, i32, i32) {
    %c0_i32 = arith.constant 0 : i32
    %c0_i32_0 = arith.constant 0 : i32
    %c0_i32_1 = arith.constant 0 : i32
    return %arg0, %arg1, %c0_i32, %c0_i32_0 : i32, i32, i32, i32
  }
}

</mosaic_0001>

<llo_original>
// kernel: tpu_custom_call.1
$region0: #{tpu_custom_call.1}
  #allocation0 [shape = 'u32[]', space=smem, size = 0x4, offset = 0x4, fixed_abs, tag = 'smem constant byte address 0x4 - core index']
  #allocation1 [shape = 'u32[144,128]{1,0:T(1,128)}', space=vmem, size = 0x12000, scoped, tag = 'internal scratch']
  %s0 = inlined_call_operand.vmem [shape: bf16[2,18,16,12], index: 0, kind: input, shape index: {}]
  %s1 = inlined_call_operand.vmem [shape: bf16[2,18,16,12], index: 1, kind: input, shape index: {}]
  %s2 = inlined_call_operand.vmem [shape: bf16[3,12,32], index: 2, kind: input, shape index: {}]
  %s3 = inlined_call_operand.hbm [shape: bf16[2,16,16,32], index: 3, kind: output, shape index: {0}]
  %s4 = inlined_call_operand.hbm [shape: f32[2,2,2,32], index: 4, kind: output, shape index: {1}]
  %5 = xla_tuple %s3, %s4
  %s6 = sld [smem:[#allocation0]]
  $region57: #{tpu_custom_call.1} parent=0
    _
  %s8 = ssub.s32 1, %s6
  %s9 = scalar_select 0, %s8, %s6
  $region1: #{tpu_custom_call.1} parent=0
    #allocation2 [shape = 'u8[65536]{0}', space=vmem, size = 0x10000, scoped, tag = 'output window, operand 0']
    #allocation3 [shape = 's32[2]{0}', space=sflag, size = 0x8, scoped, tag = 'scoped memory for tpu_custom_call.1']
    #allocation4 [shape = 'u8[2048]{0}', space=vmem, size = 0x800, scoped, tag = 'output window, operand 1']
    #allocation5 [shape = 's32[2]{0}', space=sflag, size = 0x8, scoped, tag = 'scoped memory for tpu_custom_call.1']
    %10 = vsyncpa [#allocation3], 0
    %s11 = scalar_lea.sflag [#allocation3], 1
    %12 = vsyncpa %s11, 0
    %13 = vsyncpa [#allocation5], 0
    %s14 = scalar_lea.sflag [#allocation5], 1
    %15 = vsyncpa %s14, 0
    loop: start=0, step=1, limit=6
    $region2: #{tpu_custom_call.1} parent=1 // loop_pre_header
      _
    $region3: #{tpu_custom_call.1} parent=1 // loop_header
      %s17 = sphi 0, %s21
      %p18 = scmp.ge.s32.totalorder %s17, 6
      %s24 = sphi 0, %s43
      %s25 = sphi 0, %s39
      %s26 = sphi 0, %s35
      %s27 = sphi 0, %s24
      %s28 = sphi 0, %s25
      %s29 = sphi 0, %s26
      %s30 = sphi 0, %s27
      %s31 = sphi 0, %s28
      %s32 = sphi 0, %s29
      %s50 = sphi 0, %s52
      %s53 = sphi 0, %s50
      %s54 = sphi 0, %s53
      %s70 = sphi 0, %s54
      %s84 = sphi 0, %s86
      %s87 = sphi 0, %s84
      %s88 = sphi 0, %s87
      %s104 = sphi 0, %s88
      %s108 = sphi 0, %s108
      %s110 = sphi 0, %s108
      %s111 = sphi 0, %s110
      %s125 = sphi 0, %s111
      %s135 = sphi 0, %s137
      %s138 = sphi 0, %s135
      %s139 = sphi 0, %s138
      %s155 = sphi 0, %s139
      %s163 = sphi 0, %s165
      %s166 = sphi 0, %s163
      %s167 = sphi 0, %s166
      %s183 = sphi 0, %s167
    $region4: #{tpu_custom_call.1} parent=1 // loop_header_branch
      %20 = sbr.rel (%p18) target = $region8
    $region5: #{tpu_custom_call.1} parent=1 // loop_body
      %s22 = ssub.s32 %s17, 1
      %s23 = ssub.s32 %s17, 2
      %s33 = sadd.s32 1, %s26
      %p34 = scmp.ge.s32.totalorder %s33, 1
      %s35 = scalar_select %p34, 0, %s33
      %s36 = sadd.s32 1, %s25
      %s37 = scalar_select %p34, %s36, %s25
      %p38 = scmp.ge.s32.totalorder %s37, 2
      %s39 = scalar_select %p38, 0, %s37
      %s40 = sadd.s32 1, %s24
      %s41 = scalar_select %p38, %s40, %s24
      %p42 = scmp.ge.s32.totalorder %s41, 2
      %s43 = scalar_select %p42, 0, %s41
      %s44 = sadd.s32 %s25, %s26
      %s45 = sadd.s32 %s39, %s35
      %s46 = ssub.s32 %s24, %s43
      %s47 = ssub.s32 %s44, %s45
      %s48 = sor.u32 %s46, %s47
      %p49 = scmp.eq.s32.totalorder %s48, 0
      %s51 = sadd.s32 %s50, 1
      %s52 = scalar_select %p49, %s50, %s51
      %p55 = pneg %p49
      %p56 = scmp.eq.s32.totalorder %s17, 3
      %p57 = por %p55, %p56
      %p58 = scmp.ne.s32.totalorder %s50, %s53
      %p59 = scmp.eq.s32.totalorder %s17, 0
      %p60 = por %p58, %p59
      %p61 = scmp.ne.s32.totalorder %s50, %s53
      %p62 = scmp.eq.s32.totalorder %s22, 3
      %p63 = por %p61, %p62
      %p64 = scmp.ne.s32.totalorder %s53, %s54
      %p65 = scmp.eq.s32.totalorder %s22, 0
      %p66 = por %p64, %p65
      %p67 = scmp.ne.s32.totalorder %s53, %s54
      %p68 = scmp.eq.s32.totalorder %s23, 3
      %p69 = por %p67, %p68
      %p71 = scmp.ne.s32.totalorder %s54, %s70
      %p72 = scmp.eq.s32.totalorder %s23, 0
      %p73 = por %p71, %p72
      %s74 = sadd.s32 %s25, %s26
      %s75 = sadd.s32 %s74, 1
      %s76 = smul.u32 %s75, 4
      %s77 = sadd.s32 %s39, %s35
      %s78 = sadd.s32 %s77, 1
      %s79 = smul.u32 %s78, 4
      %s80 = ssub.s32 %s24, %s43
      %s81 = ssub.s32 %s76, %s79
      %s82 = sor.u32 %s80, %s81
      %p83 = scmp.eq.s32.totalorder %s82, 0
      %s85 = sadd.s32 %s84, 1
      %s86 = scalar_select %p83, %s84, %s85
      %p89 = pneg %p83
      %p90 = scmp.eq.s32.totalorder %s17, 3
      %p91 = por %p89, %p90
      %p92 = scmp.ne.s32.totalorder %s84, %s87
      %p93 = scmp.eq.s32.totalorder %s17, 0
      %p94 = por %p92, %p93
      %p95 = scmp.ne.s32.totalorder %s84, %s87
      %p96 = scmp.eq.s32.totalorder %s22, 3
      %p97 = por %p95, %p96
      %p98 = scmp.ne.s32.totalorder %s87, %s88
      %p99 = scmp.eq.s32.totalorder %s22, 0
      %p100 = por %p98, %p99
      %p101 = scmp.ne.s32.totalorder %s87, %s88
      %p102 = scmp.eq.s32.totalorder %s23, 3
      %p103 = por %p101, %p102
      %p105 = scmp.ne.s32.totalorder %s88, %s104
      %p106 = scmp.eq.s32.totalorder %s23, 0
      %p107 = por %p105, %p106
      %s109 = sadd.s32 %s108, 1
      %p112 = scmp.eq.s32.totalorder %s17, 3
      %p113 = scmp.ne.s32.totalorder %s108, %s110
      %p114 = scmp.eq.s32.totalorder %s17, 0
      %p115 = por %p113, %p114
      %p116 = scmp.ne.s32.totalorder %s108, %s110
      %p117 = scmp.eq.s32.totalorder %s22, 3
      %p118 = por %p116, %p117
      %p119 = scmp.ne.s32.totalorder %s110, %s111
      %p120 = scmp.eq.s32.totalorder %s22, 0
      %p121 = por %p119, %p120
      %p122 = scmp.ne.s32.totalorder %s110, %s111
      %p123 = scmp.eq.s32.totalorder %s23, 3
      %p124 = por %p122, %p123
      %p126 = scmp.ne.s32.totalorder %s111, %s125
      %p127 = scmp.eq.s32.totalorder %s23, 0
      %p128 = por %p126, %p127
      %s129 = sadd.s32 %s25, %s26
      %s130 = sadd.s32 %s39, %s35
      %s131 = ssub.s32 %s24, %s43
      %s132 = ssub.s32 %s129, %s130
      %s133 = sor.u32 %s131, %s132
      %p134 = scmp.eq.s32.totalorder %s133, 0
      %s136 = sadd.s32 %s135, 1
      %s137 = scalar_select %p134, %s135, %s136
      %p140 = pneg %p134
      %p141 = scmp.eq.s32.totalorder %s17, 3
      %p142 = por %p140, %p141
      %p143 = scmp.ne.s32.totalorder %s135, %s138
      %p144 = scmp.eq.s32.totalorder %s17, 0
      %p145 = por %p143, %p144
      %p146 = scmp.ne.s32.totalorder %s135, %s138
      %p147 = scmp.eq.s32.totalorder %s22, 3
      %p148 = por %p146, %p147
      %p149 = scmp.ne.s32.totalorder %s138, %s139
      %p150 = scmp.eq.s32.totalorder %s22, 0
      %p151 = por %p149, %p150
      %p152 = scmp.ne.s32.totalorder %s138, %s139
      %p153 = scmp.eq.s32.totalorder %s23, 3
      %p154 = por %p152, %p153
      %p156 = scmp.ne.s32.totalorder %s139, %s155
      %p157 = scmp.eq.s32.totalorder %s23, 0
      %p158 = por %p156, %p157
      %s159 = ssub.s32 %s24, %s43
      %s160 = ssub.s32 %s25, %s39
      %s161 = sor.u32 %s159, %s160
      %p162 = scmp.eq.s32.totalorder %s161, 0
      %s164 = sadd.s32 %s163, 1
      %s165 = scalar_select %p162, %s163, %s164
      %p168 = pneg %p162
      %p169 = scmp.eq.s32.totalorder %s17, 3
      %p170 = por %p168, %p169
      %p171 = scmp.ne.s32.totalorder %s163, %s166
      %p172 = scmp.eq.s32.totalorder %s17, 0
      %p173 = por %p171, %p172
      %p174 = scmp.ne.s32.totalorder %s163, %s166
      %p175 = scmp.eq.s32.totalorder %s22, 3
      %p176 = por %p174, %p175
      %p177 = scmp.ne.s32.totalorder %s166, %s167
      %p178 = scmp.eq.s32.totalorder %s22, 0
      %p179 = por %p177, %p178
      %p180 = scmp.ne.s32.totalorder %s166, %s167
      %p181 = scmp.eq.s32.totalorder %s23, 3
      %p182 = por %p180, %p181
      %p184 = scmp.ne.s32.totalorder %s167, %s183
      %p185 = scmp.eq.s32.totalorder %s23, 0
      %p186 = por %p184, %p185
      %p187 = scmp.le.s32.totalorder 1, %s17
      %p188 = scmp.lt.s32.totalorder %s17, 5
      %p189 = pnand %p187, %p188
      %p190 = pneg %p189
      // Predicated region
      $region9: #{tpu_custom_call.1} parent=5 // pred_check
        _
      $region10: #{tpu_custom_call.1} parent=5 // pred_check_branch
        %192 = sbr.rel (%p189) target = $region12
      $region11: #{tpu_custom_call.1} parent=5 // pred_region
        %s193 = ssub.s32 %s17, 1
        // Predicated region
        $region13: #{tpu_custom_call.1} parent=11 // pred_check
          %p194 = pneg %p121
        $region14: #{tpu_custom_call.1} parent=11 // pred_check_branch
          %196 = sbr.rel (%p194) target = $region16
        $region15: #{tpu_custom_call.1} parent=11 // pred_region
          _
        $region16: #{tpu_custom_call.1} parent=11 // pred_fallthru
          _
      $region12: #{tpu_custom_call.1} parent=5 // pred_fallthru
        _
      %p197 = scmp.lt.s32.totalorder %s17, 4
      // Predicated region
      $region17: #{tpu_custom_call.1} parent=5 // pred_check
        %p198 = pneg %p197
      $region18: #{tpu_custom_call.1} parent=5 // pred_check_branch
        %200 = sbr.rel (%p198) target = $region20
      $region19: #{tpu_custom_call.1} parent=5 // pred_region
        // Predicated region
        $region21: #{tpu_custom_call.1} parent=19 // pred_check
          %p201 = pneg %p60
        $region22: #{tpu_custom_call.1} parent=19 // pred_check_branch
          %203 = sbr.rel (%p201) target = $region24
        $region23: #{tpu_custom_call.1} parent=19 // pred_region
          %s204 = sadd.s32 %s25, %s26
          %s205 = smul.u32 8, %s204
          %s206 = ssub.s32 18, %s205
          %p207 = scmp.lt.s32.totalorder %s206, 8
          %s208 = scalar_select %p207, %s206, 8
          %s209 = smul.u32 64, %s208
          %s210 = smul.u32 %s209, 2
          %p211 = scmp.lt.s32.totalorder %s24, 1
          %s212 = scalar_select %p211, %s24, 1
          %p213 = scmp.lt.s32.totalorder %s205, 17
          %s214 = scalar_select %p213, %s205, 17
          %s215 = smul.addr %s214, 2
          %s216 = smul.addr %s212, 36
          %s217 = sadd.s32 %s215, %s216
          %s218 = smul.addr %s217, 4
          %s219 = scalar_lea.vmem %s0, %s218
          %s220 = sadd.s32 %s25, %s26
          %s221 = smul.u32 8, %s220
          %s222 = ssub.s32 18, %s221
          %p223 = scmp.lt.s32.totalorder %s222, 8
          %s224 = scalar_select %p223, %s222, 8
          %s225 = smul.u32 64, %s224
          %s226 = smul.u32 %s225, 2
        $region24: #{tpu_custom_call.1} parent=19 // pred_fallthru
          _
        // Predicated region
        $region25: #{tpu_custom_call.1} parent=19 // pred_check
          %p227 = pneg %p94
        $region26: #{tpu_custom_call.1} parent=19 // pred_check_branch
          %229 = sbr.rel (%p227) target = $region28
        $region27: #{tpu_custom_call.1} parent=19 // pred_region
          %s230 = sadd.s32 %s25, %s26
          %s231 = sadd.s32 %s230, 1
          %s232 = smul.u32 %s231, 4
          %s233 = smul.u32 2, %s232
          %p234 = scmp.lt.s32.totalorder %s24, 1
          %s235 = scalar_select %p234, %s24, 1
          %p236 = scmp.lt.s32.totalorder %s233, 17
          %s237 = scalar_select %p236, %s233, 17
          %s238 = smul.addr %s237, 2
          %s239 = smul.addr %s235, 36
          %s240 = sadd.s32 %s238, %s239
          %s241 = smul.addr %s240, 4
          %s242 = scalar_lea.vmem %s1, %s241
          %s243 = sadd.s32 %s25, %s26
          %s244 = sadd.s32 %s243, 1
          %s245 = smul.u32 %s244, 4
          %s246 = smul.u32 2, %s245
        $region28: #{tpu_custom_call.1} parent=19 // pred_fallthru
          _
      $region20: #{tpu_custom_call.1} parent=5 // pred_fallthru
        _
      %p247 = scmp.le.s32.totalorder 1, %s17
      %p248 = scmp.lt.s32.totalorder %s17, 5
      %p249 = pnand %p247, %p248
      %p250 = pneg %p249
      // Predicated region
      $region29: #{tpu_custom_call.1} parent=5 // pred_check
        _
      $region30: #{tpu_custom_call.1} parent=5 // pred_check_branch
        %252 = sbr.rel (%p249) target = $region32
      $region31: #{tpu_custom_call.1} parent=5 // pred_region
        %s253 = ssub.s32 %s17, 1
        %s254 = sadd.s32 %s28, %s29
        %s255 = smul.u32 8, %s254
        %s256 = ssub.s32 18, %s255
        %p257 = scmp.lt.s32.totalorder %s256, 8
        %s258 = scalar_select %p257, %s256, 8
        %s259 = smul.u32 64, %s258
        %s260 = smul.u32 %s259, 2
        %p261 = scmp.lt.s32.totalorder %s27, 1
        %s262 = scalar_select %p261, %s27, 1
        %p263 = scmp.lt.s32.totalorder %s255, 17
        %s264 = scalar_select %p263, %s255, 17
        %s265 = smul.addr %s264, 2
        %s266 = smul.addr %s262, 36
        %s267 = sadd.s32 %s265, %s266
        %s268 = smul.addr %s267, 4
        %s269 = scalar_lea.vmem %s0, %s268
        %p270 = pneg %p66
        %p271 = pneg %p63
        %s272 = sadd.s32 %s28, %s29
        %s273 = sadd.s32 %s272, 1
        %s274 = smul.u32 %s273, 4
        %s275 = smul.u32 2, %s274
        %p276 = scmp.lt.s32.totalorder %s27, 1
        %s277 = scalar_select %p276, %s27, 1
        %p278 = scmp.lt.s32.totalorder %s275, 17
        %s279 = scalar_select %p278, %s275, 17
        %s280 = smul.addr %s279, 2
        %s281 = smul.addr %s277, 36
        %s282 = sadd.s32 %s280, %s281
        %s283 = smul.addr %s282, 4
        %s284 = scalar_lea.vmem %s1, %s283
        %p285 = pneg %p100
        %p286 = pneg %p97
        %p287 = pneg %p121
        %p288 = pneg %p118
        %p289 = pneg %p151
        %p290 = pneg %p148
        %s291 = sand.u32 %s138, 1
        %s292 = scalar_lea.sflag [#allocation3], %s291
        %s293 = sand.u32 %s138, 1
        %s294 = smul.addr %s293, 64
        %s295 = scalar_lea.vmem [#allocation2], %s294
        %p296 = pneg %p179
        %p297 = pneg %p176
        %s298 = sand.u32 %s166, 1
        %s299 = scalar_lea.sflag [#allocation5], %s298
        %s300 = sand.u32 %s166, 1
        %s301 = smul.addr %s300, 2
        %s302 = scalar_lea.vmem [#allocation4], %s301
        %s303 = sadd.s32 %s28, %s29
        %s304 = smul.u32 8, %s303
        %s305 = ssub.s32 18, %s304
        %p306 = scmp.lt.s32.totalorder %s305, 8
        %s307 = scalar_select %p306, %s305, 8
        %s308 = smul.u32 64, %s307
        %s309 = smul.u32 %s308, 2
        %p310 = scmp.lt.s32.totalorder %s27, 1
        %s311 = scalar_select %p310, %s27, 1
        %p312 = scmp.lt.s32.totalorder %s304, 17
        %s313 = scalar_select %p312, %s304, 17
        %s314 = smul.addr %s313, 2
        %s315 = smul.addr %s311, 36
        %s316 = sadd.s32 %s314, %s315
        %s317 = smul.addr %s316, 4
        %s318 = scalar_lea.vmem %s0, %s317
        %s319 = sadd.s32 %s28, %s29
        %s320 = smul.u32 8, %s319
        %s321 = ssub.s32 18, %s320
        %p322 = scmp.lt.s32.totalorder %s321, 8
        %s323 = scalar_select %p322, %s321, 8
        %s324 = smul.u32 64, %s323
        %s325 = smul.u32 %s324, 2
        %s326 = sadd.s32 %s28, %s29
        %s327 = sadd.s32 %s326, 1
        %s328 = smul.u32 %s327, 4
        %s329 = smul.u32 2, %s328
        %p330 = scmp.lt.s32.totalorder %s27, 1
        %s331 = scalar_select %p330, %s27, 1
        %p332 = scmp.lt.s32.totalorder %s329, 17
        %s333 = scalar_select %p332, %s329, 17
        %s334 = smul.addr %s333, 2
        %s335 = smul.addr %s331, 36
        %s336 = sadd.s32 %s334, %s335
        %s337 = smul.addr %s336, 4
        %s338 = scalar_lea.vmem %s1, %s337
        %s339 = sadd.s32 %s28, %s29
        %s340 = sadd.s32 %s339, 1
        %s341 = smul.u32 %s340, 4
        %s342 = smul.u32 2, %s341
        %s343 = sadd.s32 %s28, %s29
        %s344 = smul.u32 8, %s343
        %v346 = vld [vmem:[%s318] sm:$0xf]
        %v347 = vld [vmem:[%s318 + $0x4] sm:$0xf]
        %v348 = vld [vmem:[%s318 + $0x8] sm:$0xf]
        %v349 = vld [vmem:[%s318 + $0xc] sm:$0xf]
        %v350 = vld [vmem:[%s318 + $0x10] sm:$0xf]
        %v351 = vld [vmem:[%s318 + $0x14] sm:$0xf]
        %v352 = vld [vmem:[%s318 + $0x18] sm:$0xf]
        %v353 = vld [vmem:[%s318 + $0x1c] sm:$0xf]
        %v354 = vld [vmem:[%s318 + $0x20] sm:$0xf]
        %v355 = vld [vmem:[%s318 + $0x24] sm:$0xf]
        %v356 = vld [vmem:[%s318 + $0x28] sm:$0xf]
        %v357 = vld [vmem:[%s318 + $0x2c] sm:$0xf]
        %v358 = vld [vmem:[%s318 + $0x30] sm:$0xf]
        %v359 = vld [vmem:[%s318 + $0x34] sm:$0xf]
        %v360 = vld [vmem:[%s318 + $0x38] sm:$0xf]
        %v361 = vld [vmem:[%s318 + $0x3c] sm:$0xf]
        %v362 = vld [vmem:[%s2] sm:$0xf]
        %v363 = vld [vmem:[%s2 + $0x4] sm:$0x3]
        %s364 = scalar_lea.vmem %s318, 8
        %v365 = vld [vmem:[%s364] sm:$0xf]
        %v366 = vld [vmem:[%s364 + $0x4] sm:$0xf]
        %v367 = vld [vmem:[%s364 + $0x8] sm:$0xf]
        %v368 = vld [vmem:[%s364 + $0xc] sm:$0xf]
        %v369 = vld [vmem:[%s364 + $0x10] sm:$0xf]
        %v370 = vld [vmem:[%s364 + $0x14] sm:$0xf]
        %v371 = vld [vmem:[%s364 + $0x18] sm:$0xf]
        %v372 = vld [vmem:[%s364 + $0x1c] sm:$0xf]
        %v373 = vld [vmem:[%s364 + $0x20] sm:$0xf]
        %v374 = vld [vmem:[%s364 + $0x24] sm:$0xf]
        %v375 = vld [vmem:[%s364 + $0x28] sm:$0xf]
        %v376 = vld [vmem:[%s364 + $0x2c] sm:$0xf]
        %v377 = vld [vmem:[%s364 + $0x30] sm:$0xf]
        %v378 = vld [vmem:[%s364 + $0x34] sm:$0xf]
        %v379 = vld [vmem:[%s338] sm:$0xf]
        %v380 = vld [vmem:[%s338 + $0x4] sm:$0xf]
        %s381 = scalar_lea.vmem %s2, 8
        %v382 = vld [vmem:[%s381] sm:$0xf]
        %v383 = vld [vmem:[%s381 + $0x4] sm:$0x3]
        %v400 = vunpack.c.l.b16 %v365
        %v401 = vunpack.c.l.b16 %v366
        %v402 = vunpack.c.l.b16 %v367
        %v403 = vunpack.c.l.b16 %v368
        %v404 = vunpack.c.l.b16 %v369
        %v405 = vunpack.c.l.b16 %v370
        %v406 = vunpack.c.l.b16 %v371
        %v407 = vunpack.c.l.b16 %v372
        %v408 = vunpack.c.l.b16 %v373
        %v409 = vunpack.c.l.b16 %v374
        %v410 = vunpack.c.l.b16 %v375
        %v411 = vunpack.c.l.b16 %v376
        %v412 = vunpack.c.l.b16 %v377
        %v413 = vunpack.c.l.b16 %v378
        %v414 = vunpack.c.l.b16 %v379
        %v415 = vunpack.c.l.b16 %v380
        %v416 = vpack.c.b16 %v401, %v400
        %v417 = vpack.c.b16 %v403, %v402
        %v418 = vpack.c.b16 %v405, %v404
        %v419 = vpack.c.b16 %v407, %v406
        %v420 = vpack.c.b16 %v409, %v408
        %v421 = vpack.c.b16 %v411, %v410
        %v422 = vpack.c.b16 %v413, %v412
        %v423 = vpack.c.b16 %v415, %v414
        %v426 = vunpack.c.l.b16 %v382
        %v427 = vunpack.c.l.b16 %v383
        %v428 = vpack.c.b16 %v427, %v426
        %vm429 = vcmask 97280
        %v431 = vsel %vm429, %v416, 0
        %v434 = vsel %vm429, %v417, 0
        %v437 = vsel %vm429, %v418, 0
        %v440 = vsel %vm429, %v419, 0
        %v443 = vsel %vm429, %v420, 0
        %v446 = vsel %vm429, %v421, 0
        %v449 = vsel %vm429, %v422, 0
        %v452 = vsel %vm429, %v423, 0
        %vm454 = vcmask 1045504
        %v456 = vsel %vm454, %v428, 0
        %458 = vmatprep.subr.bf16.mxu0 0
        %459 = vmatpush1.bf16.msra.mxu0 0
        %460 = vmatprep.subr.bf16.mxu0 0
        %461 = vmatpush1.bf16.msra.mxu0 0
        %462 = vmatprep.subr.bf16.mxu0 0
        %463 = vmatpush1.bf16.msra.mxu0 0
        %464 = vmatprep.subr.bf16.mxu0 0
        %465 = vmatpush1.bf16.msra.mxu0 0
        %466 = vmatprep.subr.bf16.mxu0 0
        %467 = vmatpush1.bf16.msra.mxu0 0
        %468 = vmatprep.subr.bf16.mxu0 0
        %469 = vmatpush1.bf16.msra.mxu0 0
        %470 = vmatprep.subr.bf16.mxu0 0
        %471 = vmatpush1.bf16.msra.mxu0 0
        %472 = vmatprep.subr.bf16.mxu0 0
        %473 = vmatpush1.bf16.msra.mxu0 %v456
        %474 = vmatprep.subr.bf16.mxu0 0
        %475 = vmatpush2.bf16.msra.mxu0 0
        %476 = vmatprep.subr.bf16.mxu0 0
        %477 = vmatpush2.bf16.msra.mxu0 0
        %478 = vmatprep.subr.bf16.mxu0 0
        %479 = vmatpush2.bf16.msra.mxu0 0
        %480 = vmatprep.subr.bf16.mxu0 0
        %481 = vmatpush2.bf16.msra.mxu0 0
        %482 = vmatprep.subr.bf16.mxu0 0
        %483 = vmatpush2.bf16.msra.mxu0 0
        %484 = vmatprep.subr.bf16.mxu0 0
        %485 = vmatpush2.bf16.msra.mxu0 0
        %486 = vmatprep.subr.bf16.mxu0 0
        %487 = vmatpush2.bf16.msra.mxu0 0
        %488 = vmatprep.subr.bf16.mxu0 0
        %489 = vmatpush2.bf16.msra.mxu0 0
        %490 = vmatprep.mubr.bf16.mxu0 0
        %491 = vmatmul.mubr.bf16.gmra.mxu0 %v431
        %v492 = vpop.f32.mrf.mxu0
        %v493 = vadd.f32 0.0, %v492
        %v494 = vpop.f32.mrf.mxu0
        %v495 = vpop.f32.mrf.mxu0
        %v496 = vadd.f32 0.0, %v495
        %v497 = vpop.f32.mrf.mxu0
        %498 = vmatprep.mubr.bf16.mxu0 0
        %499 = vmatmul.mubr.bf16.gmra.mxu0 %v434
        %v500 = vpop.f32.mrf.mxu0
        %v501 = vadd.f32 0.0, %v500
        %v502 = vpop.f32.mrf.mxu0
        %v503 = vpop.f32.mrf.mxu0
        %v504 = vadd.f32 0.0, %v503
        %v505 = vpop.f32.mrf.mxu0
        %506 = vmatprep.mubr.bf16.mxu0 0
        %507 = vmatmul.mubr.bf16.gmra.mxu0 %v437
        %v508 = vpop.f32.mrf.mxu0
        %v509 = vadd.f32 0.0, %v508
        %v510 = vpop.f32.mrf.mxu0
        %v511 = vpop.f32.mrf.mxu0
        %v512 = vadd.f32 0.0, %v511
        %v513 = vpop.f32.mrf.mxu0
        %514 = vmatprep.mubr.bf16.mxu0 0
        %515 = vmatmul.mubr.bf16.gmra.mxu0 %v440
        %v516 = vpop.f32.mrf.mxu0
        %v517 = vadd.f32 0.0, %v516
        %v518 = vpop.f32.mrf.mxu0
        %v519 = vpop.f32.mrf.mxu0
        %v520 = vadd.f32 0.0, %v519
        %v521 = vpop.f32.mrf.mxu0
        %522 = vmatprep.mubr.bf16.mxu0 0
        %523 = vmatmul.mubr.bf16.gmra.mxu0 %v443
        %v524 = vpop.f32.mrf.mxu0
        %v525 = vadd.f32 0.0, %v524
        %v526 = vpop.f32.mrf.mxu0
        %v527 = vpop.f32.mrf.mxu0
        %v528 = vadd.f32 0.0, %v527
        %v529 = vpop.f32.mrf.mxu0
        %530 = vmatprep.mubr.bf16.mxu0 0
        %531 = vmatmul.mubr.bf16.gmra.mxu0 %v446
        %v532 = vpop.f32.mrf.mxu0
        %v533 = vadd.f32 0.0, %v532
        %v534 = vpop.f32.mrf.mxu0
        %v535 = vpop.f32.mrf.mxu0
        %v536 = vadd.f32 0.0, %v535
        %v537 = vpop.f32.mrf.mxu0
        %538 = vmatprep.mubr.bf16.mxu0 0
        %539 = vmatmul.mubr.bf16.gmra.mxu0 %v449
        %v540 = vpop.f32.mrf.mxu0
        %v541 = vadd.f32 0.0, %v540
        %v542 = vpop.f32.mrf.mxu0
        %v543 = vpop.f32.mrf.mxu0
        %v544 = vadd.f32 0.0, %v543
        %v545 = vpop.f32.mrf.mxu0
        %546 = vmatprep.mubr.bf16.mxu0 0
        %547 = vmatmul.mubr.bf16.gmra.mxu0 %v452
        %v548 = vpop.f32.mrf.mxu0
        %v549 = vadd.f32 0.0, %v548
        %v550 = vpop.f32.mrf.mxu0
        %v551 = vpop.f32.mrf.mxu0
        %v552 = vadd.f32 0.0, %v551
        %v553 = vpop.f32.mrf.mxu0
        %554 = vdwg.mxu0
        %v571 = vunpack.c.l.b16 %v346
        %v572 = vunpack.c.l.b16 %v347
        %v573 = vunpack.c.l.b16 %v348
        %v574 = vunpack.c.l.b16 %v349
        %v575 = vunpack.c.l.b16 %v350
        %v576 = vunpack.c.l.b16 %v351
        %v577 = vunpack.c.l.b16 %v352
        %v578 = vunpack.c.l.b16 %v353
        %v579 = vunpack.c.l.b16 %v354
        %v580 = vunpack.c.l.b16 %v355
        %v581 = vunpack.c.l.b16 %v356
        %v582 = vunpack.c.l.b16 %v357
        %v583 = vunpack.c.l.b16 %v358
        %v584 = vunpack.c.l.b16 %v359
        %v585 = vunpack.c.l.b16 %v360
        %v586 = vunpack.c.l.b16 %v361
        %v587 = vpack.c.b16 %v572, %v571
        %v588 = vpack.c.b16 %v574, %v573
        %v589 = vpack.c.b16 %v576, %v575
        %v590 = vpack.c.b16 %v578, %v577
        %v591 = vpack.c.b16 %v580, %v579
        %v592 = vpack.c.b16 %v582, %v581
        %v593 = vpack.c.b16 %v584, %v583
        %v594 = vpack.c.b16 %v586, %v585
        %v597 = vunpack.c.l.b16 %v362
        %v598 = vunpack.c.l.b16 %v363
        %v599 = vpack.c.b16 %v598, %v597
        %v601 = vsel %vm429, %v587, 0
        %v604 = vsel %vm429, %v588, 0
        %v607 = vsel %vm429, %v589, 0
        %v610 = vsel %vm429, %v590, 0
        %v613 = vsel %vm429, %v591, 0
        %v616 = vsel %vm429, %v592, 0
        %v619 = vsel %vm429, %v593, 0
        %v622 = vsel %vm429, %v594, 0
        %v625 = vsel %vm454, %v599, 0
        %627 = vmatprep.subr.bf16.mxu0 0
        %628 = vmatpush1.bf16.msra.mxu0 0
        %629 = vmatprep.subr.bf16.mxu0 0
        %630 = vmatpush1.bf16.msra.mxu0 0
        %631 = vmatprep.subr.bf16.mxu0 0
        %632 = vmatpush1.bf16.msra.mxu0 0
        %633 = vmatprep.subr.bf16.mxu0 0
        %634 = vmatpush1.bf16.msra.mxu0 0
        %635 = vmatprep.subr.bf16.mxu0 0
        %636 = vmatpush1.bf16.msra.mxu0 0
        %637 = vmatprep.subr.bf16.mxu0 0
        %638 = vmatpush1.bf16.msra.mxu0 0
        %639 = vmatprep.subr.bf16.mxu0 0
        %640 = vmatpush1.bf16.msra.mxu0 0
        %641 = vmatprep.subr.bf16.mxu0 0
        %642 = vmatpush1.bf16.msra.mxu0 %v625
        %643 = vmatprep.subr.bf16.mxu0 0
        %644 = vmatpush2.bf16.msra.mxu0 0
        %645 = vmatprep.subr.bf16.mxu0 0
        %646 = vmatpush2.bf16.msra.mxu0 0
        %647 = vmatprep.subr.bf16.mxu0 0
        %648 = vmatpush2.bf16.msra.mxu0 0
        %649 = vmatprep.subr.bf16.mxu0 0
        %650 = vmatpush2.bf16.msra.mxu0 0
        %651 = vmatprep.subr.bf16.mxu0 0
        %652 = vmatpush2.bf16.msra.mxu0 0
        %653 = vmatprep.subr.bf16.mxu0 0
        %654 = vmatpush2.bf16.msra.mxu0 0
        %655 = vmatprep.subr.bf16.mxu0 0
        %656 = vmatpush2.bf16.msra.mxu0 0
        %657 = vmatprep.subr.bf16.mxu0 0
        %658 = vmatpush2.bf16.msra.mxu0 0
        %659 = vmatprep.mubr.bf16.mxu0 0
        %660 = vmatmul.mubr.bf16.gmra.mxu0 %v601
        %v661 = vpop.f32.mrf.mxu0
        %v662 = vadd.f32 %v493, %v661
        %v663 = vpop.f32.mrf.mxu0
        %v664 = vpop.f32.mrf.mxu0
        %v665 = vadd.f32 %v496, %v664
        %v666 = vpop.f32.mrf.mxu0
        %667 = vmatprep.mubr.bf16.mxu0 0
        %668 = vmatmul.mubr.bf16.gmra.mxu0 %v604
        %v669 = vpop.f32.mrf.mxu0
        %v670 = vadd.f32 %v501, %v669
        %v671 = vpop.f32.mrf.mxu0
        %v672 = vpop.f32.mrf.mxu0
        %v673 = vadd.f32 %v504, %v672
        %v674 = vpop.f32.mrf.mxu0
        %675 = vmatprep.mubr.bf16.mxu0 0
        %676 = vmatmul.mubr.bf16.gmra.mxu0 %v607
        %v677 = vpop.f32.mrf.mxu0
        %v678 = vadd.f32 %v509, %v677
        %v679 = vpop.f32.mrf.mxu0
        %v680 = vpop.f32.mrf.mxu0
        %v681 = vadd.f32 %v512, %v680
        %v682 = vpop.f32.mrf.mxu0
        %683 = vmatprep.mubr.bf16.mxu0 0
        %684 = vmatmul.mubr.bf16.gmra.mxu0 %v610
        %v685 = vpop.f32.mrf.mxu0
        %v686 = vadd.f32 %v517, %v685
        %v687 = vpop.f32.mrf.mxu0
        %v688 = vpop.f32.mrf.mxu0
        %v689 = vadd.f32 %v520, %v688
        %v690 = vpop.f32.mrf.mxu0
        %691 = vmatprep.mubr.bf16.mxu0 0
        %692 = vmatmul.mubr.bf16.gmra.mxu0 %v613
        %v693 = vpop.f32.mrf.mxu0
        %v694 = vadd.f32 %v525, %v693
        %v695 = vpop.f32.mrf.mxu0
        %v696 = vpop.f32.mrf.mxu0
        %v697 = vadd.f32 %v528, %v696
        %v698 = vpop.f32.mrf.mxu0
        %699 = vmatprep.mubr.bf16.mxu0 0
        %700 = vmatmul.mubr.bf16.gmra.mxu0 %v616
        %v701 = vpop.f32.mrf.mxu0
        %v702 = vadd.f32 %v533, %v701
        %v703 = vpop.f32.mrf.mxu0
        %v704 = vpop.f32.mrf.mxu0
        %v705 = vadd.f32 %v536, %v704
        %v706 = vpop.f32.mrf.mxu0
        %707 = vmatprep.mubr.bf16.mxu0 0
        %708 = vmatmul.mubr.bf16.gmra.mxu0 %v619
        %v709 = vpop.f32.mrf.mxu0
        %v710 = vadd.f32 %v541, %v709
        %v711 = vpop.f32.mrf.mxu0
        %v712 = vpop.f32.mrf.mxu0
        %v713 = vadd.f32 %v544, %v712
        %v714 = vpop.f32.mrf.mxu0
        %715 = vmatprep.mubr.bf16.mxu0 0
        %716 = vmatmul.mubr.bf16.gmra.mxu0 %v622
        %v717 = vpop.f32.mrf.mxu0
        %v718 = vadd.f32 %v549, %v717
        %v719 = vpop.f32.mrf.mxu0
        %v720 = vpop.f32.mrf.mxu0
        %v721 = vadd.f32 %v552, %v720
        %v722 = vpop.f32.mrf.mxu0
        %723 = vdwg.mxu0
        %s724 = scalar_lea.vmem %s318, 16
        %v725 = vld [vmem:[%s724] sm:$0xf]
        %v726 = vld [vmem:[%s724 + $0x4] sm:$0xf]
        %v727 = vld [vmem:[%s724 + $0x8] sm:$0xf]
        %v728 = vld [vmem:[%s724 + $0xc] sm:$0xf]
        %v729 = vld [vmem:[%s724 + $0x10] sm:$0xf]
        %v730 = vld [vmem:[%s724 + $0x14] sm:$0xf]
        %v731 = vld [vmem:[%s724 + $0x18] sm:$0xf]
        %v732 = vld [vmem:[%s724 + $0x1c] sm:$0xf]
        %v733 = vld [vmem:[%s724 + $0x20] sm:$0xf]
        %v734 = vld [vmem:[%s724 + $0x24] sm:$0xf]
        %v735 = vld [vmem:[%s724 + $0x28] sm:$0xf]
        %v736 = vld [vmem:[%s724 + $0x2c] sm:$0xf]
        %v737 = vld [vmem:[%s338] sm:$0xf]
        %v738 = vld [vmem:[%s338 + $0x4] sm:$0xf]
        %v739 = vld [vmem:[%s338 + $0x8] sm:$0xf]
        %v740 = vld [vmem:[%s338 + $0xc] sm:$0xf]
        %s741 = scalar_lea.vmem %s2, 16
        %v742 = vld [vmem:[%s741] sm:$0xf]
        %v743 = vld [vmem:[%s741 + $0x4] sm:$0x3]
        %v760 = vunpack.c.l.b16 %v725
        %v761 = vunpack.c.l.b16 %v726
        %v762 = vunpack.c.l.b16 %v727
        %v763 = vunpack.c.l.b16 %v728
        %v764 = vunpack.c.l.b16 %v729
        %v765 = vunpack.c.l.b16 %v730
        %v766 = vunpack.c.l.b16 %v731
        %v767 = vunpack.c.l.b16 %v732
        %v768 = vunpack.c.l.b16 %v733
        %v769 = vunpack.c.l.b16 %v734
        %v770 = vunpack.c.l.b16 %v735
        %v771 = vunpack.c.l.b16 %v736
        %v772 = vunpack.c.l.b16 %v737
        %v773 = vunpack.c.l.b16 %v738
        %v774 = vunpack.c.l.b16 %v739
        %v775 = vunpack.c.l.b16 %v740
        %v776 = vpack.c.b16 %v761, %v760
        %v777 = vpack.c.b16 %v763, %v762
        %v778 = vpack.c.b16 %v765, %v764
        %v779 = vpack.c.b16 %v767, %v766
        %v780 = vpack.c.b16 %v769, %v768
        %v781 = vpack.c.b16 %v771, %v770
        %v782 = vpack.c.b16 %v773, %v772
        %v783 = vpack.c.b16 %v775, %v774
        %v786 = vunpack.c.l.b16 %v742
        %v787 = vunpack.c.l.b16 %v743
        %v788 = vpack.c.b16 %v787, %v786
        %v790 = vsel %vm429, %v776, 0
        %v793 = vsel %vm429, %v777, 0
        %v796 = vsel %vm429, %v778, 0
        %v799 = vsel %vm429, %v779, 0
        %v802 = vsel %vm429, %v780, 0
        %v805 = vsel %vm429, %v781, 0
        %v808 = vsel %vm429, %v782, 0
        %v811 = vsel %vm429, %v783, 0
        %v814 = vsel %vm454, %v788, 0
        %816 = vmatprep.subr.bf16.mxu0 0
        %817 = vmatpush1.bf16.msra.mxu0 0
        %818 = vmatprep.subr.bf16.mxu0 0
        %819 = vmatpush1.bf16.msra.mxu0 0
        %820 = vmatprep.subr.bf16.mxu0 0
        %821 = vmatpush1.bf16.msra.mxu0 0
        %822 = vmatprep.subr.bf16.mxu0 0
        %823 = vmatpush1.bf16.msra.mxu0 0
        %824 = vmatprep.subr.bf16.mxu0 0
        %825 = vmatpush1.bf16.msra.mxu0 0
        %826 = vmatprep.subr.bf16.mxu0 0
        %827 = vmatpush1.bf16.msra.mxu0 0
        %828 = vmatprep.subr.bf16.mxu0 0
        %829 = vmatpush1.bf16.msra.mxu0 0
        %830 = vmatprep.subr.bf16.mxu0 0
        %831 = vmatpush1.bf16.msra.mxu0 %v814
        %832 = vmatprep.subr.bf16.mxu0 0
        %833 = vmatpush2.bf16.msra.mxu0 0
        %834 = vmatprep.subr.bf16.mxu0 0
        %835 = vmatpush2.bf16.msra.mxu0 0
        %836 = vmatprep.subr.bf16.mxu0 0
        %837 = vmatpush2.bf16.msra.mxu0 0
        %838 = vmatprep.subr.bf16.mxu0 0
        %839 = vmatpush2.bf16.msra.mxu0 0
        %840 = vmatprep.subr.bf16.mxu0 0
        %841 = vmatpush2.bf16.msra.mxu0 0
        %842 = vmatprep.subr.bf16.mxu0 0
        %843 = vmatpush2.bf16.msra.mxu0 0
        %844 = vmatprep.subr.bf16.mxu0 0
        %845 = vmatpush2.bf16.msra.mxu0 0
        %846 = vmatprep.subr.bf16.mxu0 0
        %847 = vmatpush2.bf16.msra.mxu0 0
        %848 = vmatprep.mubr.bf16.mxu0 0
        %849 = vmatmul.mubr.bf16.gmra.mxu0 %v790
        %v850 = vpop.f32.mrf.mxu0
        %v851 = vadd.f32 0.0, %v850
        %v852 = vpop.f32.mrf.mxu0
        %v853 = vpop.f32.mrf.mxu0
        %v854 = vadd.f32 0.0, %v853
        %v855 = vpop.f32.mrf.mxu0
        %856 = vmatprep.mubr.bf16.mxu0 0
        %857 = vmatmul.mubr.bf16.gmra.mxu0 %v793
        %v858 = vpop.f32.mrf.mxu0
        %v859 = vadd.f32 0.0, %v858
        %v860 = vpop.f32.mrf.mxu0
        %v861 = vpop.f32.mrf.mxu0
        %v862 = vadd.f32 0.0, %v861
        %v863 = vpop.f32.mrf.mxu0
        %864 = vmatprep.mubr.bf16.mxu0 0
        %865 = vmatmul.mubr.bf16.gmra.mxu0 %v796
        %v866 = vpop.f32.mrf.mxu0
        %v867 = vadd.f32 0.0, %v866
        %v868 = vpop.f32.mrf.mxu0
        %v869 = vpop.f32.mrf.mxu0
        %v870 = vadd.f32 0.0, %v869
        %v871 = vpop.f32.mrf.mxu0
        %872 = vmatprep.mubr.bf16.mxu0 0
        %873 = vmatmul.mubr.bf16.gmra.mxu0 %v799
        %v874 = vpop.f32.mrf.mxu0
        %v875 = vadd.f32 0.0, %v874
        %v876 = vpop.f32.mrf.mxu0
        %v877 = vpop.f32.mrf.mxu0
        %v878 = vadd.f32 0.0, %v877
        %v879 = vpop.f32.mrf.mxu0
        %880 = vmatprep.mubr.bf16.mxu0 0
        %881 = vmatmul.mubr.bf16.gmra.mxu0 %v802
        %v882 = vpop.f32.mrf.mxu0
        %v883 = vadd.f32 0.0, %v882
        %v884 = vpop.f32.mrf.mxu0
        %v885 = vpop.f32.mrf.mxu0
        %v886 = vadd.f32 0.0, %v885
        %v887 = vpop.f32.mrf.mxu0
        %888 = vmatprep.mubr.bf16.mxu0 0
        %889 = vmatmul.mubr.bf16.gmra.mxu0 %v805
        %v890 = vpop.f32.mrf.mxu0
        %v891 = vadd.f32 0.0, %v890
        %v892 = vpop.f32.mrf.mxu0
        %v893 = vpop.f32.mrf.mxu0
        %v894 = vadd.f32 0.0, %v893
        %v895 = vpop.f32.mrf.mxu0
        %896 = vmatprep.mubr.bf16.mxu0 0
        %897 = vmatmul.mubr.bf16.gmra.mxu0 %v808
        %v898 = vpop.f32.mrf.mxu0
        %v899 = vadd.f32 0.0, %v898
        %v900 = vpop.f32.mrf.mxu0
        %v901 = vpop.f32.mrf.mxu0
        %v902 = vadd.f32 0.0, %v901
        %v903 = vpop.f32.mrf.mxu0
        %904 = vmatprep.mubr.bf16.mxu0 0
        %905 = vmatmul.mubr.bf16.gmra.mxu0 %v811
        %v906 = vpop.f32.mrf.mxu0
        %v907 = vadd.f32 0.0, %v906
        %v908 = vpop.f32.mrf.mxu0
        %v909 = vpop.f32.mrf.mxu0
        %v910 = vadd.f32 0.0, %v909
        %v911 = vpop.f32.mrf.mxu0
        %912 = vdwg.mxu0
        %v913 = vadd.f32 %v662, %v851
        %v914 = vadd.f32 %v665, %v854
        %v915 = vadd.f32 %v670, %v859
        %v916 = vadd.f32 %v673, %v862
        %v917 = vadd.f32 %v678, %v867
        %v918 = vadd.f32 %v681, %v870
        %v919 = vadd.f32 %v686, %v875
        %v920 = vadd.f32 %v689, %v878
        %v921 = vadd.f32 %v694, %v883
        %v922 = vadd.f32 %v697, %v886
        %v923 = vadd.f32 %v702, %v891
        %v924 = vadd.f32 %v705, %v894
        %v925 = vadd.f32 %v710, %v899
        %v926 = vadd.f32 %v713, %v902
        %v927 = vadd.f32 %v718, %v907
        %v928 = vadd.f32 %v721, %v910
        %v929 = vpack.c.bf16 %v914, %v913
        %v930 = vpack.c.bf16 %v916, %v915
        %v931 = vpack.c.bf16 %v918, %v917
        %v932 = vpack.c.bf16 %v920, %v919
        %v933 = vpack.c.bf16 %v922, %v921
        %v934 = vpack.c.bf16 %v924, %v923
        %v935 = vpack.c.bf16 %v926, %v925
        %v936 = vpack.c.bf16 %v928, %v927
        %v945 = vunpack.c.l.b16 %v929
        %v946 = vunpack.c.h.b16 %v929
        %v947 = vunpack.c.l.b16 %v930
        %v948 = vunpack.c.h.b16 %v930
        %v949 = vunpack.c.l.b16 %v931
        %v950 = vunpack.c.h.b16 %v931
        %v951 = vunpack.c.l.b16 %v932
        %v952 = vunpack.c.h.b16 %v932
        %v953 = vunpack.c.l.b16 %v933
        %v954 = vunpack.c.h.b16 %v933
        %v955 = vunpack.c.l.b16 %v934
        %v956 = vunpack.c.h.b16 %v934
        %v957 = vunpack.c.l.b16 %v935
        %v958 = vunpack.c.h.b16 %v935
        %v959 = vunpack.c.l.b16 %v936
        %v960 = vunpack.c.h.b16 %v936
        %v961 = vpack.c.b16 %v945, %v945
        %v962 = vpack.c.b16 %v946, %v946
        %v963 = vpack.c.b16 %v947, %v947
        %v964 = vpack.c.b16 %v948, %v948
        %v965 = vpack.c.b16 %v949, %v949
        %v966 = vpack.c.b16 %v950, %v950
        %v967 = vpack.c.b16 %v951, %v951
        %v968 = vpack.c.b16 %v952, %v952
        %v969 = vpack.c.b16 %v953, %v953
        %v970 = vpack.c.b16 %v954, %v954
        %v971 = vpack.c.b16 %v955, %v955
        %v972 = vpack.c.b16 %v956, %v956
        %v973 = vpack.c.b16 %v957, %v957
        %v974 = vpack.c.b16 %v958, %v958
        %v975 = vpack.c.b16 %v959, %v959
        %v976 = vpack.c.b16 %v960, %v960
        %vm993 = vcmask 257024
        %994 = vst.msk [vmem:[%s295] sm:$0xf] %vm993, %v961
        %995 = vst.msk [vmem:[%s295 + $0x4] sm:$0xf] %vm993, %v962
        %996 = vst.msk [vmem:[%s295 + $0x8] sm:$0xf] %vm993, %v963
        %997 = vst.msk [vmem:[%s295 + $0xc] sm:$0xf] %vm993, %v964
        %998 = vst.msk [vmem:[%s295 + $0x10] sm:$0xf] %vm993, %v965
        %999 = vst.msk [vmem:[%s295 + $0x14] sm:$0xf] %vm993, %v966
        %1000 = vst.msk [vmem:[%s295 + $0x18] sm:$0xf] %vm993, %v967
        %1001 = vst.msk [vmem:[%s295 + $0x1c] sm:$0xf] %vm993, %v968
        %1002 = vst.msk [vmem:[%s295 + $0x20] sm:$0xf] %vm993, %v969
        %1003 = vst.msk [vmem:[%s295 + $0x24] sm:$0xf] %vm993, %v970
        %1004 = vst.msk [vmem:[%s295 + $0x28] sm:$0xf] %vm993, %v971
        %1005 = vst.msk [vmem:[%s295 + $0x2c] sm:$0xf] %vm993, %v972
        %1006 = vst.msk [vmem:[%s295 + $0x30] sm:$0xf] %vm993, %v973
        %1007 = vst.msk [vmem:[%s295 + $0x34] sm:$0xf] %vm993, %v974
        %1008 = vst.msk [vmem:[%s295 + $0x38] sm:$0xf] %vm993, %v975
        %1009 = vst.msk [vmem:[%s295 + $0x3c] sm:$0xf] %vm993, %v976
        %v1010 = vunpack.c.l.bf16 %v929
        %v1011 = vunpack.c.h.bf16 %v929
        %v1012 = vunpack.c.l.bf16 %v930
        %v1013 = vunpack.c.h.bf16 %v930
        %v1014 = vunpack.c.l.bf16 %v931
        %v1015 = vunpack.c.h.bf16 %v931
        %v1016 = vunpack.c.l.bf16 %v932
        %v1017 = vunpack.c.h.bf16 %v932
        %v1018 = vunpack.c.l.bf16 %v933
        %v1019 = vunpack.c.h.bf16 %v933
        %v1020 = vunpack.c.l.bf16 %v934
        %v1021 = vunpack.c.h.bf16 %v934
        %v1022 = vunpack.c.l.bf16 %v935
        %v1023 = vunpack.c.h.bf16 %v935
        %v1024 = vunpack.c.l.bf16 %v936
        %v1025 = vunpack.c.h.bf16 %v936
        %vm1026 = vcmask 261120
        %v1027 = vsel %vm1026, %v1010, 0.0
        %v1028 = vsel %vm1026, %v1011, 0.0
        %v1029 = vadd.f32 %v1027, %v1028
        %v1030 = vsel %vm1026, %v1012, 0.0
        %v1031 = vadd.f32 %v1029, %v1030
        %v1032 = vsel %vm1026, %v1013, 0.0
        %v1033 = vadd.f32 %v1031, %v1032
        %v1034 = vsel %vm1026, %v1014, 0.0
        %v1035 = vadd.f32 %v1033, %v1034
        %v1036 = vsel %vm1026, %v1015, 0.0
        %v1037 = vadd.f32 %v1035, %v1036
        %v1038 = vsel %vm1026, %v1016, 0.0
        %v1039 = vadd.f32 %v1037, %v1038
        %v1040 = vsel %vm1026, %v1017, 0.0
        %v1041 = vadd.f32 %v1039, %v1040
        %v1042 = vsel %vm1026, %v1018, 0.0
        %v1043 = vadd.f32 %v1041, %v1042
        %v1044 = vsel %vm1026, %v1019, 0.0
        %v1045 = vadd.f32 %v1043, %v1044
        %v1046 = vsel %vm1026, %v1020, 0.0
        %v1047 = vadd.f32 %v1045, %v1046
        %v1048 = vsel %vm1026, %v1021, 0.0
        %v1049 = vadd.f32 %v1047, %v1048
        %v1050 = vsel %vm1026, %v1022, 0.0
        %v1051 = vadd.f32 %v1049, %v1050
        %v1052 = vsel %vm1026, %v1023, 0.0
        %v1053 = vadd.f32 %v1051, %v1052
        %v1054 = vsel %vm1026, %v1024, 0.0
        %v1055 = vadd.f32 %v1053, %v1054
        %v1056 = vsel %vm1026, %v1025, 0.0
        %v1057 = vadd.f32 %v1055, %v1056
        %v1058 = vrot.slane %v1057, 4
        %v1059 = vadd.f32 %v1057, %v1058
        %v1060 = vrot.slane %v1059, 2
        %v1061 = vadd.f32 %v1059, %v1060
        %v1062 = vrot.slane %v1061, 1
        %v1063 = vadd.f32 %v1061, %v1062
        %v1064 = vmul.f32 %v1010, %v1010
        %v1065 = vmul.f32 %v1011, %v1011
        %v1066 = vmul.f32 %v1012, %v1012
        %v1067 = vmul.f32 %v1013, %v1013
        %v1068 = vmul.f32 %v1014, %v1014
        %v1069 = vmul.f32 %v1015, %v1015
        %v1070 = vmul.f32 %v1016, %v1016
        %v1071 = vmul.f32 %v1017, %v1017
        %v1072 = vmul.f32 %v1018, %v1018
        %v1073 = vmul.f32 %v1019, %v1019
        %v1074 = vmul.f32 %v1020, %v1020
        %v1075 = vmul.f32 %v1021, %v1021
        %v1076 = vmul.f32 %v1022, %v1022
        %v1077 = vmul.f32 %v1023, %v1023
        %v1078 = vmul.f32 %v1024, %v1024
        %v1079 = vmul.f32 %v1025, %v1025
        %v1080 = vsel %vm1026, %v1064, 0.0
        %v1081 = vsel %vm1026, %v1065, 0.0
        %v1082 = vadd.f32 %v1080, %v1081
        %v1083 = vsel %vm1026, %v1066, 0.0
        %v1084 = vadd.f32 %v1082, %v1083
        %v1085 = vsel %vm1026, %v1067, 0.0
        %v1086 = vadd.f32 %v1084, %v1085
        %v1087 = vsel %vm1026, %v1068, 0.0
        %v1088 = vadd.f32 %v1086, %v1087
        %v1089 = vsel %vm1026, %v1069, 0.0
        %v1090 = vadd.f32 %v1088, %v1089
        %v1091 = vsel %vm1026, %v1070, 0.0
        %v1092 = vadd.f32 %v1090, %v1091
        %v1093 = vsel %vm1026, %v1071, 0.0
        %v1094 = vadd.f32 %v1092, %v1093
        %v1095 = vsel %vm1026, %v1072, 0.0
        %v1096 = vadd.f32 %v1094, %v1095
        %v1097 = vsel %vm1026, %v1073, 0.0
        %v1098 = vadd.f32 %v1096, %v1097
        %v1099 = vsel %vm1026, %v1074, 0.0
        %v1100 = vadd.f32 %v1098, %v1099
        %v1101 = vsel %vm1026, %v1075, 0.0
        %v1102 = vadd.f32 %v1100, %v1101
        %v1103 = vsel %vm1026, %v1076, 0.0
        %v1104 = vadd.f32 %v1102, %v1103
        %v1105 = vsel %vm1026, %v1077, 0.0
        %v1106 = vadd.f32 %v1104, %v1105
        %v1107 = vsel %vm1026, %v1078, 0.0
        %v1108 = vadd.f32 %v1106, %v1107
        %v1109 = vsel %vm1026, %v1079, 0.0
        %v1110 = vadd.f32 %v1108, %v1109
        %v1111 = vrot.slane %v1110, 4
        %v1112 = vadd.f32 %v1110, %v1111
        %v1113 = vrot.slane %v1112, 2
        %v1114 = vadd.f32 %v1112, %v1113
        %v1115 = vrot.slane %v1114, 1
        %v1116 = vadd.f32 %v1114, %v1115
        %vm1117 = vcmask 1040384
        %v1118 = vsel %vm1117, %v1063, %v1116
        %p1119 = scmp.eq.s32.totalorder %s29, 0
        // Predicated region
        $region33: #{tpu_custom_call.1} parent=31 // pred_check
          %p1120 = pneg %p1119
        $region34: #{tpu_custom_call.1} parent=31 // pred_check_branch
          %1122 = sbr.rel (%p1120) target = $region36
        $region35: #{tpu_custom_call.1} parent=31 // pred_region
          %vm1123 = vcmask 254976
          %1124 = vst.msk [vmem:[%s302] sm:$0x3] %vm1123, 0.0
        $region36: #{tpu_custom_call.1} parent=31 // pred_fallthru
          _
        %v1125 = vld [vmem:[%s302] sm:$0x3]
        %v1126 = vadd.f32 %v1125, %v1118
        %vm1127 = vcmask 254976
        %1128 = vst.msk [vmem:[%s302] sm:$0x3] %vm1127, %v1126
        %s1129 = sand.u32 %s138, 1
        %s1130 = scalar_lea.sflag [#allocation3], %s1129
        %s1131 = sand.u32 %s138, 1
        %s1132 = smul.addr %s1131, 64
        %s1133 = scalar_lea.vmem [#allocation2], %s1132
        %s1134 = sand.u32 %s166, 1
        %s1135 = scalar_lea.sflag [#allocation5], %s1134
        %s1136 = sand.u32 %s166, 1
        %s1137 = smul.addr %s1136, 2
        %s1138 = scalar_lea.vmem [#allocation4], %s1137
        // Predicated region
        $region37: #{tpu_custom_call.1} parent=31 // pred_check
          %p1139 = pneg %p148
        $region38: #{tpu_custom_call.1} parent=31 // pred_check_branch
          %1141 = sbr.rel (%p1139) target = $region40
        $region39: #{tpu_custom_call.1} parent=31 // pred_region
          %s1142 = sadd.s32 %s28, %s29
          %s1143 = smul.u32 8, %s1142
          %s1145 = ssub.s32 1024, 1024
          %1146 = vsyncadd %s1130, %s1145
          %s1147 = smul.addr %s1143, 2
          %s1148 = smul.addr %s27, 32
          %s1149 = sadd.s32 %s1147, %s1148
          %s1150 = smul.addr %s1149, 64
          %s1151 = scalar_lea.hbm %s3, %s1150
          %s1152 = sshll.u32 %s1133, 4
          %s1153 = int_to_ptr.vmem [resolvable:$true] %s1152
          %1158 = dma.vmem_to_hbm [thread:$0]  %s1153, 1024, %s1151, %s1130, 64, 64, 4
        $region40: #{tpu_custom_call.1} parent=31 // pred_fallthru
          _
        // Predicated region
        $region41: #{tpu_custom_call.1} parent=31 // pred_check
          %p1159 = pneg %p176
        $region42: #{tpu_custom_call.1} parent=31 // pred_check_branch
          %1161 = sbr.rel (%p1159) target = $region44
        $region43: #{tpu_custom_call.1} parent=31 // pred_region
          %s1163 = ssub.s32 32, 32
          %1164 = vsyncadd %s1135, %s1163
          %s1165 = smul.addr %s27, 2
          %s1166 = sadd.s32 %s28, %s1165
          %s1167 = smul.addr %s1166, 32
          %s1168 = scalar_lea.hbm %s4, %s1167
          %s1170 = sshll.u32 %s1138, 4
          %s1171 = int_to_ptr.vmem [resolvable:$true] %s1170
          %1173 = dma.vmem_to_hbm [thread:$0]  %s1171, 32, %s1168, %s1135
        $region44: #{tpu_custom_call.1} parent=31 // pred_fallthru
          _
      $region32: #{tpu_custom_call.1} parent=5 // pred_fallthru
        _
      %p1174 = scmp.le.s32.totalorder 2, %s17
      // Predicated region
      $region45: #{tpu_custom_call.1} parent=5 // pred_check
        %p1175 = pneg %p1174
      $region46: #{tpu_custom_call.1} parent=5 // pred_check_branch
        %1177 = sbr.rel (%p1175) target = $region48
      $region47: #{tpu_custom_call.1} parent=5 // pred_region
        %s1178 = ssub.s32 %s17, 2
        // Predicated region
        $region49: #{tpu_custom_call.1} parent=47 // pred_check
          %p1179 = pneg %p154
        $region50: #{tpu_custom_call.1} parent=47 // pred_check_branch
          %1181 = sbr.rel (%p1179) target = $region52
        $region51: #{tpu_custom_call.1} parent=47 // pred_region
          %s1182 = sand.u32 %s139, 1
          %s1183 = scalar_lea.sflag [#allocation3], %s1182
          %s1184 = sand.u32 %s139, 1
          %s1185 = smul.addr %s1184, 64
          %s1186 = scalar_lea.vmem [#allocation2], %s1185
          %1187 = dma.done %s1183, 1024
        $region52: #{tpu_custom_call.1} parent=47 // pred_fallthru
          _
        // Predicated region
        $region53: #{tpu_custom_call.1} parent=47 // pred_check
          %p1188 = pneg %p182
        $region54: #{tpu_custom_call.1} parent=47 // pred_check_branch
          %1190 = sbr.rel (%p1188) target = $region56
        $region55: #{tpu_custom_call.1} parent=47 // pred_region
          %s1191 = sand.u32 %s167, 1
          %s1192 = scalar_lea.sflag [#allocation5], %s1191
          %s1193 = sand.u32 %s167, 1
          %s1194 = smul.addr %s1193, 2
          %s1195 = scalar_lea.vmem [#allocation4], %s1194
          %1196 = dma.done %s1192, 32
        $region56: #{tpu_custom_call.1} parent=47 // pred_fallthru
          _
      $region48: #{tpu_custom_call.1} parent=5 // pred_fallthru
        _
    $region6: #{tpu_custom_call.1} parent=1 // loop_footer
      %s21 = sadd.s32 1, %s17
    $region7: #{tpu_custom_call.1} parent=1 // loop_footer_branch
      %16 = sbr.rel target = $region3
    $region8: #{tpu_custom_call.1} parent=1 // loop_exit
      _
    %1197 = vsyncpa [#allocation3], 1
    %s1198 = scalar_lea.sflag [#allocation3], 1
    %1199 = vsyncpa %s1198, 1
    %1200 = vsyncpa [#allocation5], 1
    %s1201 = scalar_lea.sflag [#allocation5], 1
    %1202 = vsyncpa %s1201, 1

</llo_original>
